<compile_context>
chip_gen: v7x
topology: tpu7x:2x2x1
jax: 0.10.0
libtpu: 0.0.40
codegen_flags: <defaults>
</compile_context>

<pallas_src>
import functools

import jax
import jax.numpy as jnp
from jax import lax
from jax.experimental import pallas as pl
from jax.experimental.pallas import tpu as pltpu


def _style_rand_kernel(x_ref, mean_mix_ref, var_mix_ref, o_ref, *, eps, var_den):
    """One grid step = tB batch elements.

    x_ref        : VMEM (tB, L, C)
    mean_mix_ref : VMEM (tB, 1, C)  -- (1-a)*mean + a*mean[idx_swap], precomputed
    var_mix_ref  : VMEM (tB, 1, C)  -- (1-a)*var  + a*var[idx_swap],  precomputed
    o_ref        : VMEM (tB, L, C)
    """
    x = x_ref[...].astype(jnp.float32)

    # Per-(n, c) statistics over L (torch.var default is unbiased -> ddof=1).
    mean = jnp.mean(x, axis=1, keepdims=True)                        # (tB, 1, C)
    centered = x - mean
    var = jnp.sum(centered * centered, axis=1, keepdims=True) / var_den

    # out = (x - mean)/sqrt(var+eps) * sqrt(var_mix+eps) + mean_mix
    # collapsed to a single centered scale/shift; sqrt/rsqrt on (tB,1,C) only.
    scale = jnp.sqrt(var_mix_ref[...].astype(jnp.float32) + eps) * lax.rsqrt(var + eps)
    out = centered * scale + mean_mix_ref[...].astype(jnp.float32)
    o_ref[...] = out.astype(o_ref.dtype)


def _pick_batch_block(N, L, C, itemsize, budget_bytes=8 << 20):
    """Largest divisor of N whose (x + out) double-buffered blocks fit a VMEM budget."""
    per_elem = 4 * L * C * itemsize  # x block + out block, each double-buffered
    tb = int(max(1, min(N, budget_bytes // max(per_elem, 1))))
    while N % tb:
        tb -= 1
    return tb


def style_randomization(x, idx_swap, alpha, *, eps=1e-5):
    """Training-mode forward of StyleRandomization.

    x: (N, L, C).  idx_swap: (N,) int32 permutation.  alpha: (N,) float (already /K).
    Returns (N, L, C) in x.dtype.

    NOTE: unbiased variance divides by (L-1); for L == 1 torch yields NaN — here
    the denominator is clamped to 1 (documented deviation for that edge case).
    """
    N, L, C = x.shape

    # ---- cheap stats prologue: one HBM read of x, tiny (N, C) outputs --------
    mean = jnp.mean(x, axis=1, dtype=jnp.float32)                     # (N, C)
    var = jnp.var(x.astype(jnp.float32), axis=1, ddof=1)              # (N, C)
    a = alpha.astype(jnp.float32)[:, None]                            # (N, 1)
    mean_mix = ((1.0 - a) * mean + a * mean[idx_swap])[:, None, :]    # (N, 1, C)
    var_mix = ((1.0 - a) * var + a * var[idx_swap])[:, None, :]       # (N, 1, C)

    itemsize = jnp.dtype(x.dtype).itemsize
    tb = _pick_batch_block(N, L, C, itemsize)
    # TODO(synk): for very large L*C per element (v7x 64 MiB VMEM), add an
    # L-tiling grid axis with a two-sweep stats accumulation instead of tb=1.

    kernel = functools.partial(
        _style_rand_kernel, eps=eps, var_den=float(max(L - 1, 1)))

    cost = pl.CostEstimate(
        flops=5 * N * L * C,
        transcendentals=2 * N * C,
        bytes_accessed=2 * N * L * C * itemsize + 2 * N * C * 4,
    )

    return pl.pallas_call(
        kernel,
        out_shape=jax.ShapeDtypeStruct((N, L, C), x.dtype),
        grid=(N // tb,),
        in_specs=[
            pl.BlockSpec((tb, L, C), lambda b: (b, 0, 0)),
            pl.BlockSpec((tb, 1, C), lambda b: (b, 0, 0)),
            pl.BlockSpec((tb, 1, C), lambda b: (b, 0, 0)),
        ],
        out_specs=pl.BlockSpec((tb, L, C), lambda b: (b, 0, 0)),
        compiler_params=pltpu.CompilerParams(
            dimension_semantics=("parallel",)),
        cost_estimate=cost,
    )(x, mean_mix, var_mix)


def _reference(x, idx_swap, alpha, eps=1e-5):
    """Pure-JAX reference mirroring the PyTorch training-mode forward."""
    xt = jnp.transpose(x, (0, 2, 1)).astype(jnp.float32)   # (N, C, L)
    mean = jnp.mean(xt, axis=-1, keepdims=True)
    var = jnp.var(xt, axis=-1, keepdims=True, ddof=1)
    xn = (xt - mean) / jnp.sqrt(var + eps)
    a = alpha.reshape(-1, 1, 1)
    mean_mix = (1.0 - a) * mean + a * mean[idx_swap]
    var_mix = (1.0 - a) * var + a * var[idx_swap]
    out = xn * jnp.sqrt(var_mix + eps) + mean_mix
    return jnp.transpose(out, (0, 2, 1)).astype(x.dtype)


if __name__ == "__main__":
    key = jax.random.PRNGKey(0)
    k_x, k_perm, k_alpha = jax.random.split(key, 3)

    N, L, C = 2, 16, 8
    K = 1

    x = jax.random.normal(k_x, (N, L, C), dtype=jnp.float32)
    idx_swap = jax.random.permutation(k_perm, N).astype(jnp.int32)
    alpha = jax.random.uniform(k_alpha, (N,), dtype=jnp.float32) / K

    out = jax.block_until_ready(style_randomization(x, idx_swap, alpha))
    ref = _reference(x, idx_swap, alpha)

    assert out.shape == (N, L, C)
    assert jnp.allclose(out, ref, atol=1e-5, rtol=1e-5), "mismatch vs reference"

    # TODO(synk): eval-mode forward is an identity (permute + permute back); only
    # the training branch (the actual compute) is implemented in the kernel.
    print("KERNEL_OK")
</pallas_src>

<mosaic_0001>
module attributes {stable_mosaic.version = 11 : i64} {
  func.func @_style_rand_kernel(%arg0: i32, %arg1: memref<2x16x8xf32, #tpu.memory_space<vmem>>, %arg2: memref<2x1x8xf32, #tpu.memory_space<vmem>>, %arg3: memref<2x1x8xf32, #tpu.memory_space<vmem>>, %arg4: memref<2x16x8xf32, #tpu.memory_space<vmem>>) attributes {dimension_semantics = [#tpu.dimension_semantics<parallel>], iteration_bounds = array<i64: 1>, scalar_prefetch = 0 : i64, scratch_operands = 0 : i64, tpu.core_type = #tpu.core_type<tc>, window_params = [{transform_indices = @transform_0, window_bounds = array<i64: 2, 16, 8>}, {transform_indices = @transform_1, window_bounds = array<i64: 2, 1, 8>}, {transform_indices = @transform_2, window_bounds = array<i64: 2, 1, 8>}, {transform_indices = @transform_3, window_bounds = array<i64: 2, 16, 8>}]} {
    %c0 = arith.constant 0 : index
    %c0_0 = arith.constant 0 : index
    %c0_1 = arith.constant 0 : index
    %0 = vector.load %arg1[%c0, %c0_0, %c0_1] : memref<2x16x8xf32, #tpu.memory_space<vmem>>, vector<2x16x8xf32>
    %cst = arith.constant dense<0.000000e+00> : vector<2x8xf32>
    %1 = vector.multi_reduction <add>, %0, %cst [1] : vector<2x16x8xf32> to vector<2x8xf32>
    %2 = vector.shape_cast %1 : vector<2x8xf32> to vector<2x1x8xf32>
    %cst_2 = arith.constant 1.600000e+01 : f32
    %3 = vector.broadcast %cst_2 : f32 to vector<2x1x8xf32>
    %4 = arith.divf %2, %3 : vector<2x1x8xf32>
    %5 = vector.broadcast %4 : vector<2x1x8xf32> to vector<2x16x8xf32>
    %6 = arith.subf %0, %5 : vector<2x16x8xf32>
    %7 = arith.mulf %6, %6 : vector<2x16x8xf32>
    %cst_3 = arith.constant dense<0.000000e+00> : vector<2x8xf32>
    %8 = vector.multi_reduction <add>, %7, %cst_3 [1] : vector<2x16x8xf32> to vector<2x8xf32>
    %9 = vector.shape_cast %8 : vector<2x8xf32> to vector<2x1x8xf32>
    %cst_4 = arith.constant 1.500000e+01 : f32
    %10 = vector.broadcast %cst_4 : f32 to vector<2x1x8xf32>
    %11 = arith.divf %9, %10 : vector<2x1x8xf32>
    %c0_5 = arith.constant 0 : index
    %c0_6 = arith.constant 0 : index
    %c0_7 = arith.constant 0 : index
    %12 = vector.load %arg3[%c0_5, %c0_6, %c0_7] : memref<2x1x8xf32, #tpu.memory_space<vmem>>, vector<2x1x8xf32>
    %cst_8 = arith.constant 9.99999974E-6 : f32
    %13 = vector.broadcast %cst_8 : f32 to vector<2x1x8xf32>
    %14 = arith.addf %12, %13 : vector<2x1x8xf32>
    %15 = math.sqrt %14 : vector<2x1x8xf32>
    %cst_9 = arith.constant 9.99999974E-6 : f32
    %16 = vector.broadcast %cst_9 : f32 to vector<2x1x8xf32>
    %17 = arith.addf %11, %16 : vector<2x1x8xf32>
    %18 = math.rsqrt %17 : vector<2x1x8xf32>
    %19 = arith.mulf %15, %18 : vector<2x1x8xf32>
    %20 = vector.broadcast %19 : vector<2x1x8xf32> to vector<2x16x8xf32>
    %21 = arith.mulf %6, %20 : vector<2x16x8xf32>
    %c0_10 = arith.constant 0 : index
    %c0_11 = arith.constant 0 : index
    %c0_12 = arith.constant 0 : index
    %22 = vector.load %arg2[%c0_10, %c0_11, %c0_12] : memref<2x1x8xf32, #tpu.memory_space<vmem>>, vector<2x1x8xf32>
    %23 = vector.broadcast %22 : vector<2x1x8xf32> to vector<2x16x8xf32>
    %24 = arith.addf %21, %23 : vector<2x16x8xf32>
    %c0_13 = arith.constant 0 : index
    %c0_14 = arith.constant 0 : index
    %c0_15 = arith.constant 0 : index
    %25 = vector.load %arg4[%c0_13, %c0_14, %c0_15] : memref<2x16x8xf32, #tpu.memory_space<vmem>>, vector<2x16x8xf32>
    tpu.vector_store %arg4[%c0_13, %c0_14, %c0_15], %24 {strides = array<i32>} : memref<2x16x8xf32, #tpu.memory_space<vmem>>, vector<2x16x8xf32>,
    return
  }
  func.func @transform_0(%arg0: i32) -> (i32, i32, i32) {
    %c0_i32 = arith.constant 0 : i32
    %c0_i32_0 = arith.constant 0 : i32
    %c0_i32_1 = arith.constant 0 : i32
    return %arg0, %c0_i32, %c0_i32_0 : i32, i32, i32
  }
  func.func @transform_1(%arg0: i32) -> (i32, i32, i32) {
    %c0_i32 = arith.constant 0 : i32
    %c0_i32_0 = arith.constant 0 : i32
    %c0_i32_1 = arith.constant 0 : i32
    return %arg0, %c0_i32, %c0_i32_0 : i32, i32, i32
  }
  func.func @transform_2(%arg0: i32) -> (i32, i32, i32) {
    %c0_i32 = arith.constant 0 : i32
    %c0_i32_0 = arith.constant 0 : i32
    %c0_i32_1 = arith.constant 0 : i32
    return %arg0, %c0_i32, %c0_i32_0 : i32, i32, i32
  }
  func.func @transform_3(%arg0: i32) -> (i32, i32, i32) {
    %c0_i32 = arith.constant 0 : i32
    %c0_i32_0 = arith.constant 0 : i32
    %c0_i32_1 = arith.constant 0 : i32
    return %arg0, %c0_i32, %c0_i32_0 : i32, i32, i32
  }
}

</mosaic_0001>

<llo_original>
// kernel: tpu_custom_call.1
$region0: #{tpu_custom_call.1}
  #allocation0 [shape = 'u32[]', space=smem, size = 0x4, offset = 0x4, fixed_abs, tag = 'smem constant byte address 0x4 - core index']
  #allocation1 [shape = 'u32[144,128]{1,0:T(1,128)}', space=vmem, size = 0x12000, scoped, tag = 'internal scratch']
  %s0 = inlined_call_operand.vmem [shape: f32[2,16,8], index: 0, kind: input, shape index: {}]
  %s1 = inlined_call_operand.vmem [shape: f32[2,1,8], index: 1, kind: input, shape index: {}]
  %s2 = inlined_call_operand.vmem [shape: f32[2,1,8], index: 2, kind: input, shape index: {}]
  %s3 = inlined_call_operand.vmem [shape: f32[2,16,8], index: 3, kind: output, shape index: {}]
  %s4 = sld [smem:[#allocation0]]
  $region22: #{tpu_custom_call.1} parent=0
    _
  %s6 = ssub.s32 1, %s4
  %s7 = scalar_select 0, %s6, %s4
  // Predicated region
  $region2: #{tpu_custom_call.1} parent=0 // pred_check
    _
  $region3: #{tpu_custom_call.1} parent=0 // pred_check_branch
    %9 = sbr.rel (0) target = $region5
  $region4: #{tpu_custom_call.1} parent=0 // pred_region
    _
  $region5: #{tpu_custom_call.1} parent=0 // pred_fallthru
    _
  // Predicated region
  $region6: #{tpu_custom_call.1} parent=0 // pred_check
    _
  $region7: #{tpu_custom_call.1} parent=0 // pred_check_branch
    %11 = sbr.rel (0) target = $region9
  $region8: #{tpu_custom_call.1} parent=0 // pred_region
    _
  $region9: #{tpu_custom_call.1} parent=0 // pred_fallthru
    _
  // Predicated region
  $region10: #{tpu_custom_call.1} parent=0 // pred_check
    _
  $region11: #{tpu_custom_call.1} parent=0 // pred_check_branch
    %13 = sbr.rel (0) target = $region13
  $region12: #{tpu_custom_call.1} parent=0 // pred_region
    _
  $region13: #{tpu_custom_call.1} parent=0 // pred_fallthru
    _
  %v14 = vld [vmem:[%s0] sm:$0xff]
  %v15 = vld [vmem:[%s0 + $0x8] sm:$0xff]
  %v16 = vld [vmem:[%s0 + $0x10] sm:$0xff]
  %v17 = vld [vmem:[%s0 + $0x18] sm:$0xff]
  %vm18 = vcmask 64512
  %v19 = vsel %vm18, %v14, 0.0
  %v20 = vsel %vm18, %v15, 0.0
  %v21 = vadd.f32 %v19, %v20
  %v22 = vrot.slane %v21, 4
  %v23 = vadd.f32 %v21, %v22
  %v24 = vrot.slane %v23, 2
  %v25 = vadd.f32 %v23, %v24
  %v26 = vrot.slane %v25, 1
  %v27 = vadd.f32 %v25, %v26
  %v28 = vsel %vm18, %v16, 0.0
  %v29 = vsel %vm18, %v17, 0.0
  %v30 = vadd.f32 %v28, %v29
  %v31 = vrot.slane %v30, 4
  %v32 = vadd.f32 %v30, %v31
  %v33 = vrot.slane %v32, 2
  %v34 = vadd.f32 %v32, %v33
  %v35 = vrot.slane %v34, 1
  %v36 = vadd.f32 %v34, %v35
  %v37 = vrcp.pop 16.0
  %v38 = vmul.f32 %v27, %v37
  %v39 = vmul.f32 %v36, %v37
  %v40 = vsub.f32 %v14, %v38
  %v41 = vsub.f32 %v15, %v38
  %v42 = vsub.f32 %v16, %v39
  %v43 = vsub.f32 %v17, %v39
  %v44 = vmul.f32 %v40, %v40
  %v45 = vmul.f32 %v41, %v41
  %v46 = vmul.f32 %v42, %v42
  %v47 = vmul.f32 %v43, %v43
  %v48 = vsel %vm18, %v44, 0.0
  %v49 = vsel %vm18, %v45, 0.0
  %v50 = vadd.f32 %v48, %v49
  %v51 = vrot.slane %v50, 4
  %v52 = vadd.f32 %v50, %v51
  %v53 = vrot.slane %v52, 2
  %v54 = vadd.f32 %v52, %v53
  %v55 = vrot.slane %v54, 1
  %v56 = vadd.f32 %v54, %v55
  %v57 = vsel %vm18, %v46, 0.0
  %v58 = vsel %vm18, %v47, 0.0
  %v59 = vadd.f32 %v57, %v58
  %v60 = vrot.slane %v59, 4
  %v61 = vadd.f32 %v59, %v60
  %v62 = vrot.slane %v61, 2
  %v63 = vadd.f32 %v61, %v62
  %v64 = vrot.slane %v63, 1
  %v65 = vadd.f32 %v63, %v64
  %v66 = vrcp.pop 15.0
  %v67 = vmul.f32 %v56, %v66
  %v68 = vmul.f32 %v65, %v66
  %v69 = vld [vmem:[%s2] sm:$0x1]
  %v70 = vld [vmem:[%s2 + $0x1] sm:$0x1]
  %v71 = vadd.f32 %v69, 1e-05
  %v72 = vadd.f32 %v70, 1e-05
  %v73 = vrsqrt.pop %v71
  %v74 = vmul.f32 %v71, %v73
  %vm75 = vcmp.eq.f32.partialorder %v71, inf
  %v76 = vsel %vm75, %v71, %v74
  %vm77 = vcmp.eq.f32.partialorder %v71, 0.0
  %v78 = vand.u32 %v71, 2147483648
  %v79 = vsel %vm77, %v78, %v76
  %v80 = vrsqrt.pop %v72
  %v81 = vmul.f32 %v72, %v80
  %vm82 = vcmp.eq.f32.partialorder %v72, inf
  %v83 = vsel %vm82, %v72, %v81
  %vm84 = vcmp.eq.f32.partialorder %v72, 0.0
  %v85 = vand.u32 %v72, 2147483648
  %v86 = vsel %vm84, %v85, %v83
  %v87 = vadd.f32 %v67, 1e-05
  %v88 = vadd.f32 %v68, 1e-05
  %v89 = vrsqrt.pop %v87
  %v90 = vrsqrt.pop %v88
  %v91 = vmul.f32 %v79, %v89
  %v92 = vmul.f32 %v86, %v90
  %v95 = vlaneseq
  %v96 = vshrl.u32 %v95, 7
  %v97 = vsub.s32 0, %v96
  %v98 = vrot.slane %v91, %v97
  %v99 = vlaneseq
  %v100 = vshrl.u32 %v99, 7
  %v101 = vsub.s32 0, %v100
  %v102 = vrot.slane %v92, %v101
  %v105 = vmul.f32 %v40, %v98
  %v106 = vmul.f32 %v41, %v98
  %v107 = vmul.f32 %v42, %v102
  %v108 = vmul.f32 %v43, %v102
  %v109 = vld [vmem:[%s1] sm:$0x1]
  %v110 = vld [vmem:[%s1 + $0x1] sm:$0x1]
  %v113 = vlaneseq
  %v114 = vshrl.u32 %v113, 7
  %v115 = vsub.s32 0, %v114
  %v116 = vrot.slane %v109, %v115
  %v117 = vlaneseq
  %v118 = vshrl.u32 %v117, 7
  %v119 = vsub.s32 0, %v118
  %v120 = vrot.slane %v110, %v119
  %v123 = vadd.f32 %v105, %v116
  %v124 = vadd.f32 %v106, %v116
  %v125 = vadd.f32 %v107, %v120
  %v126 = vadd.f32 %v108, %v120
  %127 = vst.msk [vmem:[%s3] sm:$0xff] %vm18, %v123
  %128 = vst.msk [vmem:[%s3 + $0x8] sm:$0xff] %vm18, %v124
  %129 = vst.msk [vmem:[%s3 + $0x10] sm:$0xff] %vm18, %v125
  %130 = vst.msk [vmem:[%s3 + $0x18] sm:$0xff] %vm18, %v126
  // Predicated region
  $region14: #{tpu_custom_call.1} parent=0 // pred_check
    _
  $region15: #{tpu_custom_call.1} parent=0 // pred_check_branch
    %132 = sbr.rel (0) target = $region17
  $region16: #{tpu_custom_call.1} parent=0 // pred_region
    _
  $region17: #{tpu_custom_call.1} parent=0 // pred_fallthru
    _
  // Predicated region
  $region18: #{tpu_custom_call.1} parent=0 // pred_check
    _
  $region19: #{tpu_custom_call.1} parent=0 // pred_check_branch
    %134 = sbr.rel (0) target = $region21
  $region20: #{tpu_custom_call.1} parent=0 // pred_region
    _
  $region21: #{tpu_custom_call.1} parent=0 // pred_fallthru
    _

</llo_original>
